<compile_context>
chip_gen: v7x
topology: tpu7x:2x2x1
jax: 0.10.0
libtpu: 0.0.40
codegen_flags: <defaults>
</compile_context>

<pallas_src>
import math

import jax
import jax.numpy as jnp
import numpy as np
from jax.experimental import pallas as pl
from jax.experimental.pallas import tpu as pltpu

WINDOW_SIZE = 11
SIGMA = 1.5
C1 = 0.01 ** 2
C2 = 0.03 ** 2


def gaussian_1d(window_size: int, sigma: float) -> np.ndarray:
    xs = np.arange(window_size, dtype=np.float64)
    g = np.exp(-((xs - window_size // 2) ** 2) / (2.0 * sigma ** 2))
    g = g / g.sum()
    return g.astype(np.float32)


def band_matrix(n: int, g: np.ndarray, pad: int) -> np.ndarray:
    # A[i, m] = g[m - i + pad] when in range, else 0  ->  (A @ x)[i] is the
    # zero-padded 1-D correlation of x with g at position i.
    ks = g.shape[0]
    idx = np.arange(n)
    k = idx[None, :] - idx[:, None] + pad
    valid = (k >= 0) & (k < ks)
    A = np.where(valid, g[np.clip(k, 0, ks - 1)], 0.0).astype(np.float32)
    return A


def _ssim_kernel(x1_ref, x2_ref, ah_ref, bdw_ref, out_ref):
    # x1_ref, x2_ref : (H, C*W) lane-packed image slabs for batch index n
    # ah_ref         : (H, H) banded Gaussian (row direction)
    # bdw_ref        : (5*C*W, 5*C*W) block-diagonal banded Gaussian, one
    #                  transposed (W, W) block per (plane, channel) lane group
    # out_ref        : (8, 128) lane-dense block holding this step's partial sum
    H, CW = x1_ref.shape

    x1 = x1_ref[...].astype(jnp.float32)
    x2 = x2_ref[...].astype(jnp.float32)
    ah = ah_ref[...]
    bdw = bdw_ref[...]

    # Five conv operands packed side-by-side along lanes: (H, 5*C*W).
    z = jnp.concatenate([x1, x2, x1 * x1, x2 * x2, x1 * x2], axis=1)

    # H-direction Gaussian conv for all planes: ONE 2-D matmul, N = 5*C*W.
    u = jnp.dot(ah, z, preferred_element_type=jnp.float32)
    # W-direction Gaussian conv for all planes: ONE 2-D matmul against the
    # block-diagonal band matrix (lane-dense K and N, no reshapes needed).
    v = jnp.dot(u, bdw, preferred_element_type=jnp.float32)

    mu1 = v[:, 0 * CW:1 * CW]
    mu2 = v[:, 1 * CW:2 * CW]
    e11 = v[:, 2 * CW:3 * CW]
    e22 = v[:, 3 * CW:4 * CW]
    e12 = v[:, 4 * CW:5 * CW]

    mu1_sq = mu1 * mu1
    mu2_sq = mu2 * mu2
    mu1_mu2 = mu1 * mu2
    sigma1_sq = e11 - mu1_sq
    sigma2_sq = e22 - mu2_sq
    sigma12 = e12 - mu1_mu2

    num = (2.0 * mu1_mu2 + C1) * (2.0 * sigma12 + C2)
    den = (mu1_sq + mu2_sq + C1) * (sigma1_sq + sigma2_sq + C2)
    ssim_map = num / den

    # Per-step partial sum broadcast across a full (8,128) tile (lane-dense
    # unmasked store). The mean is finished in the wrapper.
    out_ref[...] = jnp.full(out_ref.shape, jnp.sum(ssim_map),
                            dtype=out_ref.dtype)


def ssim(img1, img2, window_size: int = WINDOW_SIZE):
    """SSIM with size_average=True. img1/img2: (N, C, H, W) float32."""
    assert img1.shape == img2.shape
    N, C, H, W = img1.shape
    pad = window_size // 2
    CW = C * W
    PW = 5 * CW  # lanes of the packed operand slab

    g = gaussian_1d(window_size, SIGMA)
    ah = jnp.asarray(band_matrix(H, g, pad))                     # (H, H)
    awt = band_matrix(W, g, pad).T.astype(np.float32)            # (W, W)
    # One transposed band block per (plane, channel) group of W lanes.
    bdw = jnp.asarray(np.kron(np.eye(5 * C, dtype=np.float32), awt))  # (PW, PW)

    # One-time XLA-side layout change NCHW -> (N, H, C*W): the kernel only
    # ever sees lane-packed 2-D slabs, no in-kernel transpose/reshape.
    x1 = jnp.transpose(img1, (0, 2, 1, 3)).reshape(N, H, CW)
    x2 = jnp.transpose(img2, (0, 2, 1, 3)).reshape(N, H, CW)

    img_spec = pl.BlockSpec((None, H, CW), lambda n: (n, 0, 0))
    ah_spec = pl.BlockSpec((H, H), lambda n: (0, 0))
    bd_spec = pl.BlockSpec((PW, PW), lambda n: (0, 0))
    out_spec = pl.BlockSpec((None, 8, 128), lambda n: (n, 0, 0))

    # Explicit VMEM budget (v7x has only 64 MiB physical): double-buffered
    # inputs + constants + ~6 live (H, 5CW) intermediates, 2x headroom.
    per_step_bytes = (2 * 2 * H * CW            # two image slabs, double-buffered
                      + 2 * (H * H + PW * PW)   # band matrices (buffered)
                      + 2 * 8 * 128             # output block
                      + 6 * H * PW) * 4         # z/u/v + epilogue temporaries
    vmem_limit = int(min(64 * 1024 * 1024,
                         max(32 * 1024 * 1024, 2 * per_step_bytes)))

    partial = pl.pallas_call(
        _ssim_kernel,
        out_shape=jax.ShapeDtypeStruct((N, 8, 128), jnp.float32),
        grid_spec=pltpu.PrefetchScalarGridSpec(
            num_scalar_prefetch=0,
            grid=(N,),
            in_specs=[img_spec, img_spec, ah_spec, bd_spec],
            out_specs=out_spec,
        ),
        compiler_params=pltpu.CompilerParams(
            dimension_semantics=("parallel",),
            vmem_limit_bytes=vmem_limit,
        ),
    )(x1, x2, ah, bdw)

    total = jnp.sum(partial[:, 0, 0])
    count = float(N * C * H * W)
    return total / count


def ssim_ref(img1, img2, window_size: int = WINDOW_SIZE):
    """Pure-JAX reference mirroring the PyTorch _ssim (for sanity check)."""
    N, C, H, W = img1.shape
    pad = window_size // 2
    g = gaussian_1d(window_size, SIGMA)
    w2d = np.outer(g, g).astype(np.float32)[None, None]           # (1,1,ws,ws)
    window = jnp.asarray(np.tile(w2d, (C, 1, 1, 1)))               # (C,1,ws,ws)

    def conv(x):
        return jax.lax.conv_general_dilated(
            x, window, (1, 1), [(pad, pad), (pad, pad)],
            dimension_numbers=("NCHW", "OIHW", "NCHW"),
            feature_group_count=C,
        )

    mu1, mu2 = conv(img1), conv(img2)
    mu1_sq, mu2_sq, mu1_mu2 = mu1 * mu1, mu2 * mu2, mu1 * mu2
    s1 = conv(img1 * img1) - mu1_sq
    s2 = conv(img2 * img2) - mu2_sq
    s12 = conv(img1 * img2) - mu1_mu2
    ssim_map = ((2 * mu1_mu2 + C1) * (2 * s12 + C2)) / (
        (mu1_sq + mu2_sq + C1) * (s1 + s2 + C2)
    )
    return jnp.mean(ssim_map)


if __name__ == "__main__":
    key = jax.random.PRNGKey(0)
    k1, k2 = jax.random.split(key)
    N, C, H, W = 2, 4, 16, 16
    img1 = jax.random.uniform(k1, (N, C, H, W), dtype=jnp.float32)
    img2 = jax.random.uniform(k2, (N, C, H, W), dtype=jnp.float32)

    out = ssim(img1, img2)
    out = jax.block_until_ready(out)

    ref = jax.block_until_ready(ssim_ref(img1, img2))
    np.testing.assert_allclose(np.asarray(out), np.asarray(ref), rtol=1e-3, atol=1e-5)

    print("KERNEL_OK")
</pallas_src>

<mosaic_0001>
module attributes {stable_mosaic.version = 11 : i64} {
  func.func @_ssim_kernel(%arg0: i32, %arg1: memref<1x16x64xf32, #tpu.memory_space<vmem>>, %arg2: memref<1x16x64xf32, #tpu.memory_space<vmem>>, %arg3: memref<16x16xf32, #tpu.memory_space<vmem>>, %arg4: memref<320x320xf32, #tpu.memory_space<vmem>>, %arg5: memref<1x8x128xf32, #tpu.memory_space<vmem>>) attributes {dimension_semantics = [#tpu.dimension_semantics<parallel>], iteration_bounds = array<i64: 2>, scalar_prefetch = 0 : i64, scratch_operands = 0 : i64, tpu.core_type = #tpu.core_type<tc>, window_params = [{transform_indices = @transform_0, window_bounds = array<i64: 1, 16, 64>}, {transform_indices = @transform_1, window_bounds = array<i64: 1, 16, 64>}, {pipeline_mode = #tpu.pipeline_mode<synchronous>, transform_indices = @transform_2, window_bounds = array<i64: 16, 16>}, {pipeline_mode = #tpu.pipeline_mode<synchronous>, transform_indices = @transform_3, window_bounds = array<i64: 320, 320>}, {transform_indices = @transform_4, window_bounds = array<i64: 1, 8, 128>}]} {
    %c0 = arith.constant 0 : index
    %c0_0 = arith.constant 0 : index
    %c0_1 = arith.constant 0 : index
    %0 = vector.load %arg1[%c0, %c0_0, %c0_1] : memref<1x16x64xf32, #tpu.memory_space<vmem>>, vector<1x16x64xf32>
    %1 = vector.shape_cast %0 : vector<1x16x64xf32> to vector<16x64xf32>
    %c0_2 = arith.constant 0 : index
    %c0_3 = arith.constant 0 : index
    %c0_4 = arith.constant 0 : index
    %2 = vector.load %arg2[%c0_2, %c0_3, %c0_4] : memref<1x16x64xf32, #tpu.memory_space<vmem>>, vector<1x16x64xf32>
    %3 = vector.shape_cast %2 : vector<1x16x64xf32> to vector<16x64xf32>
    %c0_5 = arith.constant 0 : index
    %c0_6 = arith.constant 0 : index
    %4 = vector.load %arg3[%c0_5, %c0_6] : memref<16x16xf32, #tpu.memory_space<vmem>>, vector<16x16xf32>
    %c0_7 = arith.constant 0 : index
    %c0_8 = arith.constant 0 : index
    %5 = vector.load %arg4[%c0_7, %c0_8] : memref<320x320xf32, #tpu.memory_space<vmem>>, vector<320x320xf32>
    %6 = arith.mulf %1, %1 : vector<16x64xf32>
    %7 = arith.mulf %3, %3 : vector<16x64xf32>
    %8 = arith.mulf %1, %3 : vector<16x64xf32>
    %9 = tpu.concatenate %1, %3, %6, %7, %8 in 1 : vector<16x64xf32>, vector<16x64xf32>, vector<16x64xf32>, vector<16x64xf32>, vector<16x64xf32> -> vector<16x320xf32>
    %cst = arith.constant dense<0.000000e+00> : vector<16x320xf32>
    %10 = tpu.matmul %4, %9, %cst {dimension_numbers = #tpu.dot_dimension_numbers<[1], [0], [0], [1], [0, 0, 1, 1], [], []>} : vector<16x16xf32>, vector<16x320xf32>, vector<16x320xf32> -> vector<16x320xf32>
    %cst_9 = arith.constant dense<0.000000e+00> : vector<16x320xf32>
    %11 = tpu.matmul %10, %5, %cst_9 {dimension_numbers = #tpu.dot_dimension_numbers<[1], [0], [0], [1], [0, 0, 1, 1], [], []>} : vector<16x320xf32>, vector<320x320xf32>, vector<16x320xf32> -> vector<16x320xf32>
    %12 = vector.extract_strided_slice %11 {offsets = [0, 0], sizes = [16, 64], strides = [1, 1]} : vector<16x320xf32> to vector<16x64xf32>
    %13 = vector.extract_strided_slice %11 {offsets = [0, 64], sizes = [16, 64], strides = [1, 1]} : vector<16x320xf32> to vector<16x64xf32>
    %14 = vector.extract_strided_slice %11 {offsets = [0, 128], sizes = [16, 64], strides = [1, 1]} : vector<16x320xf32> to vector<16x64xf32>
    %15 = vector.extract_strided_slice %11 {offsets = [0, 192], sizes = [16, 64], strides = [1, 1]} : vector<16x320xf32> to vector<16x64xf32>
    %16 = vector.extract_strided_slice %11 {offsets = [0, 256], sizes = [16, 64], strides = [1, 1]} : vector<16x320xf32> to vector<16x64xf32>
    %17 = arith.mulf %12, %12 : vector<16x64xf32>
    %18 = arith.mulf %13, %13 : vector<16x64xf32>
    %19 = arith.mulf %12, %13 : vector<16x64xf32>
    %20 = arith.subf %14, %17 : vector<16x64xf32>
    %21 = arith.subf %15, %18 : vector<16x64xf32>
    %22 = arith.subf %16, %19 : vector<16x64xf32>
    %cst_10 = arith.constant 2.000000e+00 : f32
    %23 = vector.broadcast %cst_10 : f32 to vector<16x64xf32>
    %24 = arith.mulf %23, %19 : vector<16x64xf32>
    %cst_11 = arith.constant 9.99999974E-5 : f32
    %25 = vector.broadcast %cst_11 : f32 to vector<16x64xf32>
    %26 = arith.addf %24, %25 : vector<16x64xf32>
    %cst_12 = arith.constant 2.000000e+00 : f32
    %27 = vector.broadcast %cst_12 : f32 to vector<16x64xf32>
    %28 = arith.mulf %27, %22 : vector<16x64xf32>
    %cst_13 = arith.constant 8.99999984E-4 : f32
    %29 = vector.broadcast %cst_13 : f32 to vector<16x64xf32>
    %30 = arith.addf %28, %29 : vector<16x64xf32>
    %31 = arith.mulf %26, %30 : vector<16x64xf32>
    %32 = arith.addf %17, %18 : vector<16x64xf32>
    %cst_14 = arith.constant 9.99999974E-5 : f32
    %33 = vector.broadcast %cst_14 : f32 to vector<16x64xf32>
    %34 = arith.addf %32, %33 : vector<16x64xf32>
    %35 = arith.addf %20, %21 : vector<16x64xf32>
    %cst_15 = arith.constant 8.99999984E-4 : f32
    %36 = vector.broadcast %cst_15 : f32 to vector<16x64xf32>
    %37 = arith.addf %35, %36 : vector<16x64xf32>
    %38 = arith.mulf %34, %37 : vector<16x64xf32>
    %39 = arith.divf %31, %38 : vector<16x64xf32>
    %40 = vector.shape_cast %39 : vector<16x64xf32> to vector<1x16x64xf32>
    %cst_16 = arith.constant dense<0.000000e+00> : vector<1xf32>
    %41 = vector.multi_reduction <add>, %40, %cst_16 [1, 2] : vector<1x16x64xf32> to vector<1xf32>
    %42 = vector.shape_cast %41 : vector<1xf32> to vector<1x1x1xf32>
    %43 = vector.extract %42[0, 0, 0] : f32 from vector<1x1x1xf32>
    %44 = vector.broadcast %43 : f32 to vector<8x128xf32>
    %c0_17 = arith.constant 0 : index
    %c0_18 = arith.constant 0 : index
    %c0_19 = arith.constant 0 : index
    %45 = vector.load %arg5[%c0_17, %c0_18, %c0_19] : memref<1x8x128xf32, #tpu.memory_space<vmem>>, vector<1x8x128xf32>
    %46 = vector.shape_cast %45 : vector<1x8x128xf32> to vector<8x128xf32>
    %47 = vector.shape_cast %44 : vector<8x128xf32> to vector<1x8x128xf32>
    tpu.vector_store %arg5[%c0_17, %c0_18, %c0_19], %47 {strides = array<i32>} : memref<1x8x128xf32, #tpu.memory_space<vmem>>, vector<1x8x128xf32>,
    return
  }
  func.func @transform_0(%arg0: i32) -> (i32, i32, i32) {
    %c0_i32 = arith.constant 0 : i32
    %c0_i32_0 = arith.constant 0 : i32
    %c0_i32_1 = arith.constant 0 : i32
    return %arg0, %c0_i32, %c0_i32_0 : i32, i32, i32
  }
  func.func @transform_1(%arg0: i32) -> (i32, i32, i32) {
    %c0_i32 = arith.constant 0 : i32
    %c0_i32_0 = arith.constant 0 : i32
    %c0_i32_1 = arith.constant 0 : i32
    return %arg0, %c0_i32, %c0_i32_0 : i32, i32, i32
  }
  func.func @transform_2(%arg0: i32) -> (i32, i32) {
    %c0_i32 = arith.constant 0 : i32
    %c0_i32_0 = arith.constant 0 : i32
    %c0_i32_1 = arith.constant 0 : i32
    return %c0_i32, %c0_i32_0 : i32, i32
  }
  func.func @transform_3(%arg0: i32) -> (i32, i32) {
    %c0_i32 = arith.constant 0 : i32
    %c0_i32_0 = arith.constant 0 : i32
    %c0_i32_1 = arith.constant 0 : i32
    return %c0_i32, %c0_i32_0 : i32, i32
  }
  func.func @transform_4(%arg0: i32) -> (i32, i32, i32) {
    %c0_i32 = arith.constant 0 : i32
    %c0_i32_0 = arith.constant 0 : i32
    %c0_i32_1 = arith.constant 0 : i32
    return %arg0, %c0_i32, %c0_i32_0 : i32, i32, i32
  }
}

</mosaic_0001>

<llo_original>
// kernel: tpu_custom_call.1
$region0: #{tpu_custom_call.1}
  #allocation0 [shape = 'u32[]', space=smem, size = 0x4, offset = 0x4, fixed_abs, tag = 'smem constant byte address 0x4 - core index']
  #allocation1 [shape = 'u32[144,128]{1,0:T(1,128)}', space=vmem, size = 0x12000, scoped, tag = 'internal scratch']
  %s0 = inlined_call_operand.hbm [shape: f32[2,16,64], index: 0, kind: input, shape index: {}]
  %s1 = inlined_call_operand.hbm [shape: f32[2,16,64], index: 1, kind: input, shape index: {}]
  %s2 = inlined_call_operand.hbm [shape: f32[16,16], index: 2, kind: input, shape index: {}]
  %s3 = inlined_call_operand.hbm [shape: f32[320,320], index: 3, kind: input, shape index: {}]
  %s4 = inlined_call_operand.hbm [shape: f32[2,8,128], index: 4, kind: output, shape index: {}]
  %s5 = sld [smem:[#allocation0]]
  $region65: #{tpu_custom_call.1} parent=0
    _
  %s7 = ssub.s32 1, %s5
  %s8 = scalar_select 0, %s7, %s5
  $region1: #{tpu_custom_call.1} parent=0
    #allocation2 [shape = 'u8[16384]{0}', space=vmem, size = 0x4000, scoped, tag = 'input window, operand 0']
    #allocation3 [shape = 's32[2]{0}', space=sflag, size = 0x8, scoped, tag = 'scoped memory for tpu_custom_call.1']
    #allocation4 [shape = 's32[2]{0}', space=sflag, size = 0x8, scoped, tag = 'scoped memory for tpu_custom_call.1']
    #allocation5 [shape = 'u8[16384]{0}', space=vmem, size = 0x4000, scoped, tag = 'input window, operand 1']
    #allocation6 [shape = 's32[2]{0}', space=sflag, size = 0x8, scoped, tag = 'scoped memory for tpu_custom_call.1']
    #allocation7 [shape = 'u8[8192]{0}', space=vmem, size = 0x2000, scoped, tag = 'input window, operand 2, single buffered']
    #allocation8 [shape = 'u8[491520]{0}', space=vmem, size = 0x78000, scoped, tag = 'input window, operand 3, single buffered']
    #allocation9 [shape = 's32[1]{0}', space=sflag, size = 0x4, scoped, tag = 'scoped memory for tpu_custom_call.1']
    #allocation10 [shape = 'u8[8192]{0}', space=vmem, size = 0x2000, scoped, tag = 'output window, operand 0']
    %9 = vsyncpa [#allocation3], 0
    %s10 = scalar_lea.sflag [#allocation3], 1
    %11 = vsyncpa %s10, 0
    %12 = vsyncpa [#allocation6], 0
    %s13 = scalar_lea.sflag [#allocation6], 1
    %14 = vsyncpa %s13, 0
    %15 = vsyncpa [#allocation9], 0
    %16 = vsyncpa [#allocation4], 0
    %s17 = scalar_lea.sflag [#allocation4], 1
    %18 = vsyncpa %s17, 0
    loop: start=0, step=1, limit=4
    $region2: #{tpu_custom_call.1} parent=1 // loop_pre_header
      _
    $region3: #{tpu_custom_call.1} parent=1 // loop_header
      %s20 = sphi 0, %s24
      %p21 = scmp.ge.s32.totalorder %s20, 4
      %s30 = sphi 0, %s32
      %s33 = sphi 0, %s30
      %s34 = sphi 0, %s33
      %s50 = sphi 0, %s34
      %s56 = sphi 0, %s58
      %s59 = sphi 0, %s56
      %s60 = sphi 0, %s59
      %s76 = sphi 0, %s60
      %s80 = sphi 0, %s80
      %s82 = sphi 0, %s80
      %s83 = sphi 0, %s82
      %s97 = sphi 0, %s83
      %s101 = sphi 0, %s101
      %s103 = sphi 0, %s101
      %s104 = sphi 0, %s103
      %s118 = sphi 0, %s104
      %s124 = sphi 0, %s126
      %s127 = sphi 0, %s124
      %s128 = sphi 0, %s127
      %s144 = sphi 0, %s128
    $region4: #{tpu_custom_call.1} parent=1 // loop_header_branch
      %23 = sbr.rel (%p21) target = $region8
    $region5: #{tpu_custom_call.1} parent=1 // loop_body
      %s25 = ssub.s32 %s20, 1
      %s26 = ssub.s32 %s20, 2
      %s27 = sadd.s32 %s20, 1
      %s28 = ssub.s32 %s20, %s27
      %p29 = scmp.eq.s32.totalorder %s28, 0
      %s31 = sadd.s32 %s30, 1
      %s32 = scalar_select %p29, %s30, %s31
      %p35 = pneg %p29
      %p36 = scmp.eq.s32.totalorder %s20, 1
      %p37 = por %p35, %p36
      %p38 = scmp.ne.s32.totalorder %s30, %s33
      %p39 = scmp.eq.s32.totalorder %s20, 0
      %p40 = por %p38, %p39
      %p41 = scmp.ne.s32.totalorder %s30, %s33
      %p42 = scmp.eq.s32.totalorder %s25, 1
      %p43 = por %p41, %p42
      %p44 = scmp.ne.s32.totalorder %s33, %s34
      %p45 = scmp.eq.s32.totalorder %s25, 0
      %p46 = por %p44, %p45
      %p47 = scmp.ne.s32.totalorder %s33, %s34
      %p48 = scmp.eq.s32.totalorder %s26, 1
      %p49 = por %p47, %p48
      %p51 = scmp.ne.s32.totalorder %s34, %s50
      %p52 = scmp.eq.s32.totalorder %s26, 0
      %p53 = por %p51, %p52
      %s54 = ssub.s32 %s20, %s27
      %p55 = scmp.eq.s32.totalorder %s54, 0
      %s57 = sadd.s32 %s56, 1
      %s58 = scalar_select %p55, %s56, %s57
      %p61 = pneg %p55
      %p62 = scmp.eq.s32.totalorder %s20, 1
      %p63 = por %p61, %p62
      %p64 = scmp.ne.s32.totalorder %s56, %s59
      %p65 = scmp.eq.s32.totalorder %s20, 0
      %p66 = por %p64, %p65
      %p67 = scmp.ne.s32.totalorder %s56, %s59
      %p68 = scmp.eq.s32.totalorder %s25, 1
      %p69 = por %p67, %p68
      %p70 = scmp.ne.s32.totalorder %s59, %s60
      %p71 = scmp.eq.s32.totalorder %s25, 0
      %p72 = por %p70, %p71
      %p73 = scmp.ne.s32.totalorder %s59, %s60
      %p74 = scmp.eq.s32.totalorder %s26, 1
      %p75 = por %p73, %p74
      %p77 = scmp.ne.s32.totalorder %s60, %s76
      %p78 = scmp.eq.s32.totalorder %s26, 0
      %p79 = por %p77, %p78
      %s81 = sadd.s32 %s80, 1
      %p84 = scmp.eq.s32.totalorder %s20, 1
      %p85 = scmp.ne.s32.totalorder %s80, %s82
      %p86 = scmp.eq.s32.totalorder %s20, 0
      %p87 = por %p85, %p86
      %p88 = scmp.ne.s32.totalorder %s80, %s82
      %p89 = scmp.eq.s32.totalorder %s25, 1
      %p90 = por %p88, %p89
      %p91 = scmp.ne.s32.totalorder %s82, %s83
      %p92 = scmp.eq.s32.totalorder %s25, 0
      %p93 = por %p91, %p92
      %p94 = scmp.ne.s32.totalorder %s82, %s83
      %p95 = scmp.eq.s32.totalorder %s26, 1
      %p96 = por %p94, %p95
      %p98 = scmp.ne.s32.totalorder %s83, %s97
      %p99 = scmp.eq.s32.totalorder %s26, 0
      %p100 = por %p98, %p99
      %s102 = sadd.s32 %s101, 1
      %p105 = scmp.eq.s32.totalorder %s20, 1
      %p106 = scmp.ne.s32.totalorder %s101, %s103
      %p107 = scmp.eq.s32.totalorder %s20, 0
      %p108 = por %p106, %p107
      %p109 = scmp.ne.s32.totalorder %s101, %s103
      %p110 = scmp.eq.s32.totalorder %s25, 1
      %p111 = por %p109, %p110
      %p112 = scmp.ne.s32.totalorder %s103, %s104
      %p113 = scmp.eq.s32.totalorder %s25, 0
      %p114 = por %p112, %p113
      %p115 = scmp.ne.s32.totalorder %s103, %s104
      %p116 = scmp.eq.s32.totalorder %s26, 1
      %p117 = por %p115, %p116
      %p119 = scmp.ne.s32.totalorder %s104, %s118
      %p120 = scmp.eq.s32.totalorder %s26, 0
      %p121 = por %p119, %p120
      %s122 = ssub.s32 %s20, %s27
      %p123 = scmp.eq.s32.totalorder %s122, 0
      %s125 = sadd.s32 %s124, 1
      %s126 = scalar_select %p123, %s124, %s125
      %p129 = pneg %p123
      %p130 = scmp.eq.s32.totalorder %s20, 1
      %p131 = por %p129, %p130
      %p132 = scmp.ne.s32.totalorder %s124, %s127
      %p133 = scmp.eq.s32.totalorder %s20, 0
      %p134 = por %p132, %p133
      %p135 = scmp.ne.s32.totalorder %s124, %s127
      %p136 = scmp.eq.s32.totalorder %s25, 1
      %p137 = por %p135, %p136
      %p138 = scmp.ne.s32.totalorder %s127, %s128
      %p139 = scmp.eq.s32.totalorder %s25, 0
      %p140 = por %p138, %p139
      %p141 = scmp.ne.s32.totalorder %s127, %s128
      %p142 = scmp.eq.s32.totalorder %s26, 1
      %p143 = por %p141, %p142
      %p145 = scmp.ne.s32.totalorder %s128, %s144
      %p146 = scmp.eq.s32.totalorder %s26, 0
      %p147 = por %p145, %p146
      %p148 = scmp.le.s32.totalorder 1, %s20
      %p149 = scmp.lt.s32.totalorder %s20, 3
      %p150 = pnand %p148, %p149
      %p151 = pneg %p150
      // Predicated region
      $region9: #{tpu_custom_call.1} parent=5 // pred_check
        _
      $region10: #{tpu_custom_call.1} parent=5 // pred_check_branch
        %153 = sbr.rel (%p150) target = $region12
      $region11: #{tpu_custom_call.1} parent=5 // pred_region
        %s154 = ssub.s32 %s20, 1
        // Predicated region
        $region13: #{tpu_custom_call.1} parent=11 // pred_check
          %p155 = pneg %p93
        $region14: #{tpu_custom_call.1} parent=11 // pred_check_branch
          %157 = sbr.rel (%p155) target = $region16
        $region15: #{tpu_custom_call.1} parent=11 // pred_region
          %s159 = ssub.s32 256, 256
          %160 = vsyncadd [#allocation6], %s159
          %s161 = sshll.u32 [#allocation7], 4
          %s162 = int_to_ptr.vmem [resolvable:$true] %s161
          %167 = dma.hbm_to_vmem [thread:$0]  %s2, 256, %s162, [#allocation6], 128, 128, 8
        $region16: #{tpu_custom_call.1} parent=11 // pred_fallthru
          _
        // Predicated region
        $region17: #{tpu_custom_call.1} parent=11 // pred_check
          %p168 = pneg %p114
        $region18: #{tpu_custom_call.1} parent=11 // pred_check_branch
          %170 = sbr.rel (%p168) target = $region20
        $region19: #{tpu_custom_call.1} parent=11 // pred_region
          %s172 = ssub.s32 15360, 15360
          %173 = vsyncadd [#allocation9], %s172
          %s174 = sshll.u32 [#allocation8], 4
          %s175 = int_to_ptr.vmem [resolvable:$true] %s174
          %180 = dma.hbm_to_vmem [thread:$0]  %s3, 15360, %s175, [#allocation9], 384, 384, 24
        $region20: #{tpu_custom_call.1} parent=11 // pred_fallthru
          _
      $region12: #{tpu_custom_call.1} parent=5 // pred_fallthru
        _
      %p181 = scmp.lt.s32.totalorder %s20, 2
      // Predicated region
      $region21: #{tpu_custom_call.1} parent=5 // pred_check
        %p182 = pneg %p181
      $region22: #{tpu_custom_call.1} parent=5 // pred_check_branch
        %184 = sbr.rel (%p182) target = $region24
      $region23: #{tpu_custom_call.1} parent=5 // pred_region
        // Predicated region
        $region25: #{tpu_custom_call.1} parent=23 // pred_check
          %p185 = pneg %p40
        $region26: #{tpu_custom_call.1} parent=23 // pred_check_branch
          %187 = sbr.rel (%p185) target = $region28
        $region27: #{tpu_custom_call.1} parent=23 // pred_region
          %s188 = sand.u32 %s30, 1
          %s189 = scalar_lea.sflag [#allocation3], %s188
          %s190 = sand.u32 %s30, 1
          %s191 = smul.addr %s190, 16
          %s192 = scalar_lea.vmem [#allocation2], %s191
          %s194 = ssub.s32 256, 256
          %195 = vsyncadd %s189, %s194
          %s196 = smul.addr %s20, 2
          %s197 = smul.addr %s196, 128
          %s198 = scalar_lea.hbm %s0, %s197
          %s199 = sshll.u32 %s192, 4
          %s200 = int_to_ptr.vmem [resolvable:$true] %s199
          %205 = dma.hbm_to_vmem [thread:$0]  %s198, 256, %s200, %s189, 128, 128, 8
        $region28: #{tpu_custom_call.1} parent=23 // pred_fallthru
          _
        // Predicated region
        $region29: #{tpu_custom_call.1} parent=23 // pred_check
          %p206 = pneg %p66
        $region30: #{tpu_custom_call.1} parent=23 // pred_check_branch
          %208 = sbr.rel (%p206) target = $region32
        $region31: #{tpu_custom_call.1} parent=23 // pred_region
          %s209 = sand.u32 %s20, 1
          %s210 = scalar_lea.sflag [#allocation6], %s209
          %s211 = sand.u32 %s56, 1
          %s212 = smul.addr %s211, 16
          %s213 = scalar_lea.vmem [#allocation5], %s212
          %s215 = ssub.s32 256, 256
          %216 = vsyncadd %s210, %s215
          %s217 = smul.addr %s20, 2
          %s218 = smul.addr %s217, 128
          %s219 = scalar_lea.hbm %s1, %s218
          %s220 = sshll.u32 %s213, 4
          %s221 = int_to_ptr.vmem [resolvable:$true] %s220
          %226 = dma.hbm_to_vmem [thread:$0]  %s219, 256, %s221, %s210, 128, 128, 8
        $region32: #{tpu_custom_call.1} parent=23 // pred_fallthru
          _
      $region24: #{tpu_custom_call.1} parent=5 // pred_fallthru
        _
      %p227 = scmp.le.s32.totalorder 1, %s20
      %p228 = scmp.lt.s32.totalorder %s20, 3
      %p229 = pnand %p227, %p228
      %p230 = pneg %p229
      // Predicated region
      $region33: #{tpu_custom_call.1} parent=5 // pred_check
        _
      $region34: #{tpu_custom_call.1} parent=5 // pred_check_branch
        %232 = sbr.rel (%p229) target = $region36
      $region35: #{tpu_custom_call.1} parent=5 // pred_region
        %s233 = ssub.s32 %s20, 1
        %s234 = sand.u32 %s33, 1
        %s235 = scalar_lea.sflag [#allocation3], %s234
        %s236 = sand.u32 %s33, 1
        %s237 = smul.addr %s236, 16
        %s238 = scalar_lea.vmem [#allocation2], %s237
        // Predicated region
        $region37: #{tpu_custom_call.1} parent=35 // pred_check
          %p239 = pneg %p46
        $region38: #{tpu_custom_call.1} parent=35 // pred_check_branch
          %241 = sbr.rel (%p239) target = $region40
        $region39: #{tpu_custom_call.1} parent=35 // pred_region
          %242 = dma.done %s235, 256
        $region40: #{tpu_custom_call.1} parent=35 // pred_fallthru
          _
        %s243 = sand.u32 %s25, 1
        %s244 = scalar_lea.sflag [#allocation6], %s243
        %s245 = sand.u32 %s59, 1
        %s246 = smul.addr %s245, 16
        %s247 = scalar_lea.vmem [#allocation5], %s246
        // Predicated region
        $region41: #{tpu_custom_call.1} parent=35 // pred_check
          %p248 = pneg %p72
        $region42: #{tpu_custom_call.1} parent=35 // pred_check_branch
          %250 = sbr.rel (%p248) target = $region44
        $region43: #{tpu_custom_call.1} parent=35 // pred_region
          %251 = dma.done %s244, 256
        $region44: #{tpu_custom_call.1} parent=35 // pred_fallthru
          _
        // Predicated region
        $region45: #{tpu_custom_call.1} parent=35 // pred_check
          %p252 = pneg %p93
        $region46: #{tpu_custom_call.1} parent=35 // pred_check_branch
          %254 = sbr.rel (%p252) target = $region48
        $region47: #{tpu_custom_call.1} parent=35 // pred_region
          %255 = dma.done [#allocation6], 256
        $region48: #{tpu_custom_call.1} parent=35 // pred_fallthru
          _
        // Predicated region
        $region49: #{tpu_custom_call.1} parent=35 // pred_check
          %p256 = pneg %p114
        $region50: #{tpu_custom_call.1} parent=35 // pred_check_branch
          %258 = sbr.rel (%p256) target = $region52
        $region51: #{tpu_custom_call.1} parent=35 // pred_region
          %259 = dma.done [#allocation9], 15360
        $region52: #{tpu_custom_call.1} parent=35 // pred_fallthru
          _
        %s260 = sand.u32 %s33, 1
        %s261 = scalar_lea.sflag [#allocation3], %s260
        %s262 = sand.u32 %s33, 1
        %s263 = smul.addr %s262, 16
        %s264 = scalar_lea.vmem [#allocation2], %s263
        %p265 = pneg %p46
        %p266 = pneg %p43
        %s267 = sand.u32 %s25, 1
        %s268 = scalar_lea.sflag [#allocation6], %s267
        %s269 = sand.u32 %s59, 1
        %s270 = smul.addr %s269, 16
        %s271 = scalar_lea.vmem [#allocation5], %s270
        %p272 = pneg %p72
        %p273 = pneg %p69
        %p274 = pneg %p93
        %p275 = pneg %p90
        %p276 = pneg %p114
        %p277 = pneg %p111
        %p278 = pneg %p140
        %p279 = pneg %p137
        %s280 = sand.u32 %s127, 1
        %s281 = scalar_lea.sflag [#allocation4], %s280
        %s282 = sand.u32 %s127, 1
        %s283 = smul.addr %s282, 8
        %s284 = scalar_lea.vmem [#allocation10], %s283
        %v285 = vld [vmem:[%s238] sm:$0xff]
        %v286 = vld [vmem:[%s238 + $0x8] sm:$0xff]
        %v287 = vld [vmem:[%s247] sm:$0xff]
        %v288 = vld [vmem:[%s247 + $0x8] sm:$0xff]
        %v289 = vld [vmem:[#allocation7] sm:$0xff]
        %v290 = vld [vmem:[#allocation7 + $0x8] sm:$0xff]
        %v291 = vld [vmem:[#allocation8] sm:$0xff]
        %v292 = vld [vmem:[#allocation8 + $0x8] sm:$0xff]
        %v293 = vld [vmem:[#allocation8 + $0x10] sm:$0xff]
        %v294 = vld [vmem:[#allocation8 + $0x18] sm:$0xff]
        %v295 = vld [vmem:[#allocation8 + $0x20] sm:$0xff]
        %v296 = vld [vmem:[#allocation8 + $0x28] sm:$0xff]
        %v297 = vld [vmem:[#allocation8 + $0x30] sm:$0xff]
        %v298 = vld [vmem:[#allocation8 + $0x38] sm:$0xff]
        %v299 = vld [vmem:[#allocation8 + $0x40] sm:$0xff]
        %v300 = vld [vmem:[#allocation8 + $0x48] sm:$0xff]
        %v301 = vld [vmem:[#allocation8 + $0x50] sm:$0xff]
        %v302 = vld [vmem:[#allocation8 + $0x58] sm:$0xff]
        %v303 = vld [vmem:[#allocation8 + $0x60] sm:$0xff]
        %v304 = vld [vmem:[#allocation8 + $0x68] sm:$0xff]
        %v305 = vld [vmem:[#allocation8 + $0x70] sm:$0xff]
        %v306 = vld [vmem:[#allocation8 + $0x78] sm:$0xff]
        %v307 = vld [vmem:[#allocation8 + $0x80] sm:$0xff]
        %v308 = vld [vmem:[#allocation8 + $0x88] sm:$0xff]
        %v309 = vld [vmem:[#allocation8 + $0x90] sm:$0xff]
        %v310 = vld [vmem:[#allocation8 + $0x98] sm:$0xff]
        %v311 = vld [vmem:[#allocation8 + $0xa0] sm:$0xff]
        %v312 = vld [vmem:[#allocation8 + $0xa8] sm:$0xff]
        %v313 = vld [vmem:[#allocation8 + $0xb0] sm:$0xff]
        %v314 = vld [vmem:[#allocation8 + $0xb8] sm:$0xff]
        %v315 = vld [vmem:[#allocation8 + $0xc0] sm:$0xff]
        %v316 = vld [vmem:[#allocation8 + $0xc8] sm:$0xff]
        %v317 = vld [vmem:[#allocation8 + $0xd0] sm:$0xff]
        %v318 = vld [vmem:[#allocation8 + $0xd8] sm:$0xff]
        %v319 = vld [vmem:[#allocation8 + $0xe0] sm:$0xff]
        %v320 = vld [vmem:[#allocation8 + $0xe8] sm:$0xff]
        %v321 = vld [vmem:[#allocation8 + $0xf0] sm:$0xff]
        %v322 = vld [vmem:[#allocation8 + $0xf8] sm:$0xff]
        %v323 = vld [vmem:[#allocation8 + $0x100] sm:$0xff]
        %v324 = vld [vmem:[#allocation8 + $0x108] sm:$0xff]
        %v325 = vld [vmem:[#allocation8 + $0x110] sm:$0xff]
        %v326 = vld [vmem:[#allocation8 + $0x118] sm:$0xff]
        %v327 = vld [vmem:[#allocation8 + $0x120] sm:$0xff]
        %v328 = vld [vmem:[#allocation8 + $0x128] sm:$0xff]
        %v329 = vld [vmem:[#allocation8 + $0x130] sm:$0xff]
        %v330 = vld [vmem:[#allocation8 + $0x138] sm:$0xff]
        %v331 = vld [vmem:[#allocation8 + $0x140] sm:$0xff]
        %v332 = vld [vmem:[#allocation8 + $0x148] sm:$0xff]
        %v333 = vld [vmem:[#allocation8 + $0x150] sm:$0xff]
        %v334 = vld [vmem:[#allocation8 + $0x158] sm:$0xff]
        %v335 = vld [vmem:[#allocation8 + $0x160] sm:$0xff]
        %v336 = vld [vmem:[#allocation8 + $0x168] sm:$0xff]
        %v337 = vld [vmem:[#allocation8 + $0x170] sm:$0xff]
        %v338 = vld [vmem:[#allocation8 + $0x178] sm:$0xff]
        %v339 = vld [vmem:[#allocation8 + $0x180] sm:$0xff]
        %v340 = vld [vmem:[#allocation8 + $0x188] sm:$0xff]
        %v341 = vld [vmem:[#allocation8 + $0x190] sm:$0xff]
        %v342 = vld [vmem:[#allocation8 + $0x198] sm:$0xff]
        %v343 = vld [vmem:[#allocation8 + $0x1a0] sm:$0xff]
        %v344 = vld [vmem:[#allocation8 + $0x1a8] sm:$0xff]
        %v345 = vld [vmem:[#allocation8 + $0x1b0] sm:$0xff]
        %v346 = vld [vmem:[#allocation8 + $0x1b8] sm:$0xff]
        %v347 = vld [vmem:[#allocation8 + $0x1c0] sm:$0xff]
        %v348 = vld [vmem:[#allocation8 + $0x1c8] sm:$0xff]
        %v349 = vld [vmem:[#allocation8 + $0x1d0] sm:$0xff]
        %v350 = vld [vmem:[#allocation8 + $0x1d8] sm:$0xff]
        %v351 = vld [vmem:[#allocation8 + $0x1e0] sm:$0xff]
        %v352 = vld [vmem:[#allocation8 + $0x1e8] sm:$0xff]
        %v353 = vld [vmem:[#allocation8 + $0x1f0] sm:$0xff]
        %v354 = vld [vmem:[#allocation8 + $0x1f8] sm:$0xff]
        %v355 = vld [vmem:[#allocation8 + $0x200] sm:$0xff]
        %v356 = vld [vmem:[#allocation8 + $0x208] sm:$0xff]
        %v357 = vld [vmem:[#allocation8 + $0x210] sm:$0xff]
        %v358 = vld [vmem:[#allocation8 + $0x218] sm:$0xff]
        %v359 = vld [vmem:[#allocation8 + $0x220] sm:$0xff]
        %v360 = vld [vmem:[#allocation8 + $0x228] sm:$0xff]
        %v361 = vld [vmem:[#allocation8 + $0x230] sm:$0xff]
        %v362 = vld [vmem:[#allocation8 + $0x238] sm:$0xff]
        %v363 = vld [vmem:[#allocation8 + $0x240] sm:$0xff]
        %v364 = vld [vmem:[#allocation8 + $0x248] sm:$0xff]
        %v365 = vld [vmem:[#allocation8 + $0x250] sm:$0xff]
        %v366 = vld [vmem:[#allocation8 + $0x258] sm:$0xff]
        %v367 = vld [vmem:[#allocation8 + $0x260] sm:$0xff]
        %v368 = vld [vmem:[#allocation8 + $0x268] sm:$0xff]
        %v369 = vld [vmem:[#allocation8 + $0x270] sm:$0xff]
        %v370 = vld [vmem:[#allocation8 + $0x278] sm:$0xff]
        %v371 = vld [vmem:[#allocation8 + $0x280] sm:$0xff]
        %v372 = vld [vmem:[#allocation8 + $0x288] sm:$0xff]
        %v373 = vld [vmem:[#allocation8 + $0x290] sm:$0xff]
        %v374 = vld [vmem:[#allocation8 + $0x298] sm:$0xff]
        %v375 = vld [vmem:[#allocation8 + $0x2a0] sm:$0xff]
        %v376 = vld [vmem:[#allocation8 + $0x2a8] sm:$0xff]
        %v377 = vld [vmem:[#allocation8 + $0x2b0] sm:$0xff]
        %v378 = vld [vmem:[#allocation8 + $0x2b8] sm:$0xff]
        %v379 = vld [vmem:[#allocation8 + $0x2c0] sm:$0xff]
        %v380 = vld [vmem:[#allocation8 + $0x2c8] sm:$0xff]
        %v381 = vld [vmem:[#allocation8 + $0x2d0] sm:$0xff]
        %v382 = vld [vmem:[#allocation8 + $0x2d8] sm:$0xff]
        %v383 = vld [vmem:[#allocation8 + $0x2e0] sm:$0xff]
        %v384 = vld [vmem:[#allocation8 + $0x2e8] sm:$0xff]
        %v385 = vld [vmem:[#allocation8 + $0x2f0] sm:$0xff]
        %v386 = vld [vmem:[#allocation8 + $0x2f8] sm:$0xff]
        %v387 = vld [vmem:[#allocation8 + $0x300] sm:$0xff]
        %v388 = vld [vmem:[#allocation8 + $0x308] sm:$0xff]
        %v389 = vld [vmem:[#allocation8 + $0x310] sm:$0xff]
        %v390 = vld [vmem:[#allocation8 + $0x318] sm:$0xff]
        %v391 = vld [vmem:[#allocation8 + $0x320] sm:$0xff]
        %v392 = vld [vmem:[#allocation8 + $0x328] sm:$0xff]
        %v393 = vld [vmem:[#allocation8 + $0x330] sm:$0xff]
        %v394 = vld [vmem:[#allocation8 + $0x338] sm:$0xff]
        %v395 = vld [vmem:[#allocation8 + $0x340] sm:$0xff]
        %v396 = vld [vmem:[#allocation8 + $0x348] sm:$0xff]
        %v397 = vld [vmem:[#allocation8 + $0x350] sm:$0xff]
        %v398 = vld [vmem:[#allocation8 + $0x358] sm:$0xff]
        %v399 = vld [vmem:[#allocation8 + $0x360] sm:$0xff]
        %v400 = vld [vmem:[#allocation8 + $0x368] sm:$0xff]
        %v401 = vld [vmem:[#allocation8 + $0x370] sm:$0xff]
        %v402 = vld [vmem:[#allocation8 + $0x378] sm:$0xff]
        %v403 = vld [vmem:[#allocation8 + $0x380] sm:$0xff]
        %v404 = vld [vmem:[#allocation8 + $0x388] sm:$0xff]
        %v405 = vld [vmem:[#allocation8 + $0x390] sm:$0xff]
        %v406 = vld [vmem:[#allocation8 + $0x398] sm:$0xff]
        %v407 = vld [vmem:[#allocation8 + $0x3a0] sm:$0xff]
        %v408 = vld [vmem:[#allocation8 + $0x3a8] sm:$0xff]
        %v409 = vld [vmem:[#allocation8 + $0x3b0] sm:$0xff]
        %v410 = vld [vmem:[#allocation8 + $0x3b8] sm:$0xff]
        %v411 = vmul.f32 %v285, %v285
        %v412 = vmul.f32 %v286, %v286
        %v413 = vmul.f32 %v287, %v287
        %v414 = vmul.f32 %v288, %v288
        %v415 = vmul.f32 %v285, %v287
        %v416 = vmul.f32 %v286, %v288
        %419 = vrot.lane.b32.xlu0 %v287, 64
        %v420 = vpop.permute.xlu0 %419
        %421 = vrot.lane.b32.xlu0 %v288, 64
        %v422 = vpop.permute.xlu0 %421
        %427 = vrot.lane.b32.xlu0 %v413, 64
        %v428 = vpop.permute.xlu0 %427
        %429 = vrot.lane.b32.xlu0 %v414, 64
        %v430 = vpop.permute.xlu0 %429
        %vm433 = vcmask 523264
        %v434 = vsel %vm433, %v285, %v420
        %v435 = vsel %vm433, %v286, %v422
        %v436 = vsel %vm433, %v411, %v428
        %v437 = vsel %vm433, %v412, %v430
        %vm438 = vcmask 130048
        %v440 = vsel %vm438, %v289, 0
        %v443 = vsel %vm438, %v290, 0
        %445 = vmatprep.subr.mxu0 %v436
        %446 = vmatpush1.msra.mxu0 %v434
        %447 = vmatprep.subr.mxu0 %v437
        %448 = vmatpush1.msra.mxu0 %v435
        %449 = vmatprep.subr.mxu0 0.0
        %450 = vmatpush1.msra.mxu0 0.0
        %451 = vmatprep.subr.mxu0 0.0
        %452 = vmatpush1.msra.mxu0 0.0
        %453 = vmatprep.subr.mxu0 0.0
        %454 = vmatpush1.msra.mxu0 0.0
        %455 = vmatprep.subr.mxu0 0.0
        %456 = vmatpush1.msra.mxu0 0.0
        %457 = vmatprep.subr.mxu0 0.0
        %458 = vmatpush1.msra.mxu0 0.0
        %459 = vmatprep.subr.mxu0 0.0
        %460 = vmatpush1.msra.mxu0 0.0
        %461 = vmatprep.subr.mxu0 0.0
        %462 = vmatpush1.msra.mxu0 0.0
        %463 = vmatprep.subr.mxu0 0.0
        %464 = vmatpush1.msra.mxu0 0.0
        %465 = vmatprep.subr.mxu0 0.0
        %466 = vmatpush1.msra.mxu0 0.0
        %467 = vmatprep.subr.mxu0 0.0
        %468 = vmatpush1.msra.mxu0 0.0
        %469 = vmatprep.subr.mxu0 0.0
        %470 = vmatpush1.msra.mxu0 0.0
        %471 = vmatprep.subr.mxu0 0.0
        %472 = vmatpush1.msra.mxu0 0.0
        %473 = vmatprep.subr.mxu0 0.0
        %474 = vmatpush1.msra.mxu0 0.0
        %475 = vmatprep.subr.mxu0 0.0
        %476 = vmatpush1.msra.mxu0 0.0
        %477 = vmatprep.subr.mxu0 0.0
        %478 = vmatpush1.msra.mxu0 0.0
        %479 = vmatprep.subr.mxu0 0.0
        %480 = vmatpush1.msra.mxu0 0.0
        %481 = vmatprep.subr.mxu0 0.0
        %482 = vmatpush1.msra.mxu0 0.0
        %483 = vmatprep.subr.mxu0 0.0
        %484 = vmatpush1.msra.mxu0 0.0
        %485 = vmatprep.subr.mxu0 0.0
        %486 = vmatpush1.msra.mxu0 0.0
        %487 = vmatprep.subr.mxu0 0.0
        %488 = vmatpush1.msra.mxu0 0.0
        %489 = vmatprep.subr.mxu0 0.0
        %490 = vmatpush1.msra.mxu0 0.0
        %491 = vmatprep.subr.mxu0 0.0
        %492 = vmatpush1.msra.mxu0 0.0
        %493 = vmatprep.subr.mxu0 0.0
        %494 = vmatpush1.msra.mxu0 0.0
        %495 = vmatprep.subr.mxu0 0.0
        %496 = vmatpush1.msra.mxu0 0.0
        %497 = vmatprep.subr.mxu0 0.0
        %498 = vmatpush1.msra.mxu0 0.0
        %499 = vmatprep.subr.mxu0 0.0
        %500 = vmatpush1.msra.mxu0 0.0
        %501 = vmatprep.subr.mxu0 0.0
        %502 = vmatpush1.msra.mxu0 0.0
        %503 = vmatprep.subr.mxu0 0.0
        %504 = vmatpush1.msra.mxu0 0.0
        %505 = vmatprep.subr.mxu0 0.0
        %506 = vmatpush1.msra.mxu0 0.0
        %507 = vmatprep.subr.mxu0 0.0
        %508 = vmatpush1.msra.mxu0 0.0
        %509 = vmatprep.mubr.f32.mxu0 0.0
        %510 = vmatmul.mubr.f32.gmra.mrb[0].mxu0 %v440
        %v511 = vpop.f32.mrb[0].mxu0
        %v512 = vadd.f32 0.0, %v511
        %v513 = vpop.f32.mrb[0].mxu0
        %v514 = vadd.f32 0.0, %v513
        %515 = vmatprep.mubr.f32.mxu0 0.0
        %516 = vmatmul.mubr.f32.gmra.mrb[0].mxu0 %v443
        %v517 = vpop.f32.mrb[0].mxu0
        %v518 = vadd.f32 0.0, %v517
        %v519 = vpop.f32.mrb[0].mxu0
        %v520 = vadd.f32 0.0, %v519
        %521 = vdwg.mxu0
        %522 = vmatprep.subr.mxu0 0.0
        %523 = vmatpush1.msra.mxu0 %v415
        %524 = vmatprep.subr.mxu0 0.0
        %525 = vmatpush1.msra.mxu0 %v416
        %526 = vmatprep.subr.mxu0 0.0
        %527 = vmatpush1.msra.mxu0 0.0
        %528 = vmatprep.subr.mxu0 0.0
        %529 = vmatpush1.msra.mxu0 0.0
        %530 = vmatprep.subr.mxu0 0.0
        %531 = vmatpush1.msra.mxu0 0.0
        %532 = vmatprep.subr.mxu0 0.0
        %533 = vmatpush1.msra.mxu0 0.0
        %534 = vmatprep.subr.mxu0 0.0
        %535 = vmatpush1.msra.mxu0 0.0
        %536 = vmatprep.subr.mxu0 0.0
        %537 = vmatpush1.msra.mxu0 0.0
        %538 = vmatprep.subr.mxu0 0.0
        %539 = vmatpush1.msra.mxu0 0.0
        %540 = vmatprep.subr.mxu0 0.0
        %541 = vmatpush1.msra.mxu0 0.0
        %542 = vmatprep.subr.mxu0 0.0
        %543 = vmatpush1.msra.mxu0 0.0
        %544 = vmatprep.subr.mxu0 0.0
        %545 = vmatpush1.msra.mxu0 0.0
        %546 = vmatprep.subr.mxu0 0.0
        %547 = vmatpush1.msra.mxu0 0.0
        %548 = vmatprep.subr.mxu0 0.0
        %549 = vmatpush1.msra.mxu0 0.0
        %550 = vmatprep.subr.mxu0 0.0
        %551 = vmatpush1.msra.mxu0 0.0
        %552 = vmatprep.subr.mxu0 0.0
        %553 = vmatpush1.msra.mxu0 0.0
        %554 = vmatprep.subr.mxu0 0.0
        %555 = vmatpush1.msra.mxu0 0.0
        %556 = vmatprep.subr.mxu0 0.0
        %557 = vmatpush1.msra.mxu0 0.0
        %558 = vmatprep.subr.mxu0 0.0
        %559 = vmatpush1.msra.mxu0 0.0
        %560 = vmatprep.subr.mxu0 0.0
        %561 = vmatpush1.msra.mxu0 0.0
        %562 = vmatprep.subr.mxu0 0.0
        %563 = vmatpush1.msra.mxu0 0.0
        %564 = vmatprep.subr.mxu0 0.0
        %565 = vmatpush1.msra.mxu0 0.0
        %566 = vmatprep.subr.mxu0 0.0
        %567 = vmatpush1.msra.mxu0 0.0
        %568 = vmatprep.subr.mxu0 0.0
        %569 = vmatpush1.msra.mxu0 0.0
        %570 = vmatprep.subr.mxu0 0.0
        %571 = vmatpush1.msra.mxu0 0.0
        %572 = vmatprep.subr.mxu0 0.0
        %573 = vmatpush1.msra.mxu0 0.0
        %574 = vmatprep.subr.mxu0 0.0
        %575 = vmatpush1.msra.mxu0 0.0
        %576 = vmatprep.subr.mxu0 0.0
        %577 = vmatpush1.msra.mxu0 0.0
        %578 = vmatprep.subr.mxu0 0.0
        %579 = vmatpush1.msra.mxu0 0.0
        %580 = vmatprep.subr.mxu0 0.0
        %581 = vmatpush1.msra.mxu0 0.0
        %582 = vmatprep.subr.mxu0 0.0
        %583 = vmatpush1.msra.mxu0 0.0
        %584 = vmatprep.subr.mxu0 0.0
        %585 = vmatpush1.msra.mxu0 0.0
        %586 = vmatprep.mubr.f32.mxu0 0.0
        %587 = vmatmul.mubr.f32.gmra.mrb[0].mxu0 %v440
        %v588 = vpop.f32.mrb[0].mxu0
        %v589 = vadd.f32 0.0, %v588
        %v590 = vpop.f32.mrb[0].mxu0
        %591 = vmatprep.mubr.f32.mxu0 0.0
        %592 = vmatmul.mubr.f32.gmra.mrb[0].mxu0 %v443
        %v593 = vpop.f32.mrb[0].mxu0
        %v594 = vadd.f32 0.0, %v593
        %v595 = vpop.f32.mrb[0].mxu0
        %596 = vdwg.mxu0
        %v598 = vsel %vm433, %v589, 0
        %v601 = vsel %vm433, %v594, 0
        %603 = vmatprep.subr.mxu0 %v292
        %604 = vmatpush1.msra.mxu0 %v291
        %605 = vmatprep.subr.mxu0 %v295
        %606 = vmatpush1.msra.mxu0 %v294
        %607 = vmatprep.subr.mxu0 %v298
        %608 = vmatpush1.msra.mxu0 %v297
        %609 = vmatprep.subr.mxu0 %v301
        %610 = vmatpush1.msra.mxu0 %v300
        %611 = vmatprep.subr.mxu0 %v304
        %612 = vmatpush1.msra.mxu0 %v303
        %613 = vmatprep.subr.mxu0 %v307
        %614 = vmatpush1.msra.mxu0 %v306
        %615 = vmatprep.subr.mxu0 %v310
        %616 = vmatpush1.msra.mxu0 %v309
        %617 = vmatprep.subr.mxu0 %v313
        %618 = vmatpush1.msra.mxu0 %v312
        %619 = vmatprep.subr.mxu0 %v316
        %620 = vmatpush1.msra.mxu0 %v315
        %621 = vmatprep.subr.mxu0 %v319
        %622 = vmatpush1.msra.mxu0 %v318
        %623 = vmatprep.subr.mxu0 %v322
        %624 = vmatpush1.msra.mxu0 %v321
        %625 = vmatprep.subr.mxu0 %v325
        %626 = vmatpush1.msra.mxu0 %v324
        %627 = vmatprep.subr.mxu0 %v328
        %628 = vmatpush1.msra.mxu0 %v327
        %629 = vmatprep.subr.mxu0 %v331
        %630 = vmatpush1.msra.mxu0 %v330
        %631 = vmatprep.subr.mxu0 %v334
        %632 = vmatpush1.msra.mxu0 %v333
        %633 = vmatprep.subr.mxu0 %v337
        %634 = vmatpush1.msra.mxu0 %v336
        %635 = vmatprep.subr.mxu0 %v340
        %636 = vmatpush1.msra.mxu0 %v339
        %637 = vmatprep.subr.mxu0 %v343
        %638 = vmatpush1.msra.mxu0 %v342
        %639 = vmatprep.subr.mxu0 %v346
        %640 = vmatpush1.msra.mxu0 %v345
        %641 = vmatprep.subr.mxu0 %v349
        %642 = vmatpush1.msra.mxu0 %v348
        %643 = vmatprep.subr.mxu0 %v352
        %644 = vmatpush1.msra.mxu0 %v351
        %645 = vmatprep.subr.mxu0 %v355
        %646 = vmatpush1.msra.mxu0 %v354
        %647 = vmatprep.subr.mxu0 %v358
        %648 = vmatpush1.msra.mxu0 %v357
        %649 = vmatprep.subr.mxu0 %v361
        %650 = vmatpush1.msra.mxu0 %v360
        %651 = vmatprep.subr.mxu0 %v364
        %652 = vmatpush1.msra.mxu0 %v363
        %653 = vmatprep.subr.mxu0 %v367
        %654 = vmatpush1.msra.mxu0 %v366
        %655 = vmatprep.subr.mxu0 %v370
        %656 = vmatpush1.msra.mxu0 %v369
        %657 = vmatprep.subr.mxu0 %v373
        %658 = vmatpush1.msra.mxu0 %v372
        %659 = vmatprep.subr.mxu0 %v376
        %660 = vmatpush1.msra.mxu0 %v375
        %661 = vmatprep.subr.mxu0 %v379
        %662 = vmatpush1.msra.mxu0 %v378
        %663 = vmatprep.subr.mxu0 %v382
        %664 = vmatpush1.msra.mxu0 %v381
        %665 = vmatprep.subr.mxu0 %v385
        %666 = vmatpush1.msra.mxu0 %v384
        %667 = vmatprep.mubr.f32.mxu0 %v514
        %668 = vmatmul.mubr.f32.gmra.mrb[0].mxu0 %v512
        %v669 = vpop.f32.mrb[0].mxu0
        %v670 = vadd.f32 0.0, %v669
        %v671 = vpop.f32.mrb[0].mxu0
        %v672 = vadd.f32 0.0, %v671
        %673 = vmatprep.mubr.f32.mxu0 %v520
        %674 = vmatmul.mubr.f32.gmra.mrb[0].mxu0 %v518
        %v675 = vpop.f32.mrb[0].mxu0
        %v676 = vadd.f32 0.0, %v675
        %v677 = vpop.f32.mrb[0].mxu0
        %v678 = vadd.f32 0.0, %v677
        %679 = vdwg.mxu0
        %680 = vmatprep.subr.mxu0 %v388
        %681 = vmatpush1.msra.mxu0 %v387
        %682 = vmatprep.subr.mxu0 %v391
        %683 = vmatpush1.msra.mxu0 %v390
        %684 = vmatprep.subr.mxu0 %v394
        %685 = vmatpush1.msra.mxu0 %v393
        %686 = vmatprep.subr.mxu0 %v397
        %687 = vmatpush1.msra.mxu0 %v396
        %688 = vmatprep.subr.mxu0 %v400
        %689 = vmatpush1.msra.mxu0 %v399
        %690 = vmatprep.subr.mxu0 %v403
        %691 = vmatpush1.msra.mxu0 %v402
        %692 = vmatprep.subr.mxu0 %v406
        %693 = vmatpush1.msra.mxu0 %v405
        %694 = vmatprep.subr.mxu0 %v409
        %695 = vmatpush1.msra.mxu0 %v408
        %696 = vmatprep.subr.mxu0 0.0
        %697 = vmatpush1.msra.mxu0 0.0
        %698 = vmatprep.subr.mxu0 0.0
        %699 = vmatpush1.msra.mxu0 0.0
        %700 = vmatprep.subr.mxu0 0.0
        %701 = vmatpush1.msra.mxu0 0.0
        %702 = vmatprep.subr.mxu0 0.0
        %703 = vmatpush1.msra.mxu0 0.0
        %704 = vmatprep.subr.mxu0 0.0
        %705 = vmatpush1.msra.mxu0 0.0
        %706 = vmatprep.subr.mxu0 0.0
        %707 = vmatpush1.msra.mxu0 0.0
        %708 = vmatprep.subr.mxu0 0.0
        %709 = vmatpush1.msra.mxu0 0.0
        %710 = vmatprep.subr.mxu0 0.0
        %711 = vmatpush1.msra.mxu0 0.0
        %712 = vmatprep.subr.mxu0 0.0
        %713 = vmatpush1.msra.mxu0 0.0
        %714 = vmatprep.subr.mxu0 0.0
        %715 = vmatpush1.msra.mxu0 0.0
        %716 = vmatprep.subr.mxu0 0.0
        %717 = vmatpush1.msra.mxu0 0.0
        %718 = vmatprep.subr.mxu0 0.0
        %719 = vmatpush1.msra.mxu0 0.0
        %720 = vmatprep.subr.mxu0 0.0
        %721 = vmatpush1.msra.mxu0 0.0
        %722 = vmatprep.subr.mxu0 0.0
        %723 = vmatpush1.msra.mxu0 0.0
        %724 = vmatprep.subr.mxu0 0.0
        %725 = vmatpush1.msra.mxu0 0.0
        %726 = vmatprep.subr.mxu0 0.0
        %727 = vmatpush1.msra.mxu0 0.0
        %728 = vmatprep.subr.mxu0 0.0
        %729 = vmatpush1.msra.mxu0 0.0
        %730 = vmatprep.subr.mxu0 0.0
        %731 = vmatpush1.msra.mxu0 0.0
        %732 = vmatprep.subr.mxu0 0.0
        %733 = vmatpush1.msra.mxu0 0.0
        %734 = vmatprep.subr.mxu0 0.0
        %735 = vmatpush1.msra.mxu0 0.0
        %736 = vmatprep.subr.mxu0 0.0
        %737 = vmatpush1.msra.mxu0 0.0
        %738 = vmatprep.subr.mxu0 0.0
        %739 = vmatpush1.msra.mxu0 0.0
        %740 = vmatprep.subr.mxu0 0.0
        %741 = vmatpush1.msra.mxu0 0.0
        %742 = vmatprep.subr.mxu0 0.0
        %743 = vmatpush1.msra.mxu0 0.0
        %744 = vmatprep.mubr.f32.mxu0 0.0
        %745 = vmatmul.mubr.f32.gmra.mrb[0].mxu0 %v598
        %v746 = vpop.f32.mrb[0].mxu0
        %v747 = vadd.f32 %v670, %v746
        %v748 = vpop.f32.mrb[0].mxu0
        %v749 = vadd.f32 %v672, %v748
        %750 = vmatprep.mubr.f32.mxu0 0.0
        %751 = vmatmul.mubr.f32.gmra.mrb[0].mxu0 %v601
        %v752 = vpop.f32.mrb[0].mxu0
        %v753 = vadd.f32 %v676, %v752
        %v754 = vpop.f32.mrb[0].mxu0
        %v755 = vadd.f32 %v678, %v754
        %756 = vdwg.mxu0
        %757 = vmatprep.subr.mxu0 0.0
        %758 = vmatpush1.msra.mxu0 %v293
        %759 = vmatprep.subr.mxu0 0.0
        %760 = vmatpush1.msra.mxu0 %v296
        %761 = vmatprep.subr.mxu0 0.0
        %762 = vmatpush1.msra.mxu0 %v299
        %763 = vmatprep.subr.mxu0 0.0
        %764 = vmatpush1.msra.mxu0 %v302
        %765 = vmatprep.subr.mxu0 0.0
        %766 = vmatpush1.msra.mxu0 %v305
        %767 = vmatprep.subr.mxu0 0.0
        %768 = vmatpush1.msra.mxu0 %v308
        %769 = vmatprep.subr.mxu0 0.0
        %770 = vmatpush1.msra.mxu0 %v311
        %771 = vmatprep.subr.mxu0 0.0
        %772 = vmatpush1.msra.mxu0 %v314
        %773 = vmatprep.subr.mxu0 0.0
        %774 = vmatpush1.msra.mxu0 %v317
        %775 = vmatprep.subr.mxu0 0.0
        %776 = vmatpush1.msra.mxu0 %v320
        %777 = vmatprep.subr.mxu0 0.0
        %778 = vmatpush1.msra.mxu0 %v323
        %779 = vmatprep.subr.mxu0 0.0
        %780 = vmatpush1.msra.mxu0 %v326
        %781 = vmatprep.subr.mxu0 0.0
        %782 = vmatpush1.msra.mxu0 %v329
        %783 = vmatprep.subr.mxu0 0.0
        %784 = vmatpush1.msra.mxu0 %v332
        %785 = vmatprep.subr.mxu0 0.0
        %786 = vmatpush1.msra.mxu0 %v335
        %787 = vmatprep.subr.mxu0 0.0
        %788 = vmatpush1.msra.mxu0 %v338
        %789 = vmatprep.subr.mxu0 0.0
        %790 = vmatpush1.msra.mxu0 %v341
        %791 = vmatprep.subr.mxu0 0.0
        %792 = vmatpush1.msra.mxu0 %v344
        %793 = vmatprep.subr.mxu0 0.0
        %794 = vmatpush1.msra.mxu0 %v347
        %795 = vmatprep.subr.mxu0 0.0
        %796 = vmatpush1.msra.mxu0 %v350
        %797 = vmatprep.subr.mxu0 0.0
        %798 = vmatpush1.msra.mxu0 %v353
        %799 = vmatprep.subr.mxu0 0.0
        %800 = vmatpush1.msra.mxu0 %v356
        %801 = vmatprep.subr.mxu0 0.0
        %802 = vmatpush1.msra.mxu0 %v359
        %803 = vmatprep.subr.mxu0 0.0
        %804 = vmatpush1.msra.mxu0 %v362
        %805 = vmatprep.subr.mxu0 0.0
        %806 = vmatpush1.msra.mxu0 %v365
        %807 = vmatprep.subr.mxu0 0.0
        %808 = vmatpush1.msra.mxu0 %v368
        %809 = vmatprep.subr.mxu0 0.0
        %810 = vmatpush1.msra.mxu0 %v371
        %811 = vmatprep.subr.mxu0 0.0
        %812 = vmatpush1.msra.mxu0 %v374
        %813 = vmatprep.subr.mxu0 0.0
        %814 = vmatpush1.msra.mxu0 %v377
        %815 = vmatprep.subr.mxu0 0.0
        %816 = vmatpush1.msra.mxu0 %v380
        %817 = vmatprep.subr.mxu0 0.0
        %818 = vmatpush1.msra.mxu0 %v383
        %819 = vmatprep.subr.mxu0 0.0
        %820 = vmatpush1.msra.mxu0 %v386
        %821 = vmatprep.mubr.f32.mxu0 %v514
        %822 = vmatmul.mubr.f32.gmra.mrb[0].mxu0 %v512
        %v823 = vpop.f32.mrb[0].mxu0
        %v824 = vadd.f32 0.0, %v823
        %v825 = vpop.f32.mrb[0].mxu0
        %826 = vmatprep.mubr.f32.mxu0 %v520
        %827 = vmatmul.mubr.f32.gmra.mrb[0].mxu0 %v518
        %v828 = vpop.f32.mrb[0].mxu0
        %v829 = vadd.f32 0.0, %v828
        %v830 = vpop.f32.mrb[0].mxu0
        %831 = vdwg.mxu0
        %832 = vmatprep.subr.mxu0 0.0
        %833 = vmatpush1.msra.mxu0 %v389
        %834 = vmatprep.subr.mxu0 0.0
        %835 = vmatpush1.msra.mxu0 %v392
        %836 = vmatprep.subr.mxu0 0.0
        %837 = vmatpush1.msra.mxu0 %v395
        %838 = vmatprep.subr.mxu0 0.0
        %839 = vmatpush1.msra.mxu0 %v398
        %840 = vmatprep.subr.mxu0 0.0
        %841 = vmatpush1.msra.mxu0 %v401
        %842 = vmatprep.subr.mxu0 0.0
        %843 = vmatpush1.msra.mxu0 %v404
        %844 = vmatprep.subr.mxu0 0.0
        %845 = vmatpush1.msra.mxu0 %v407
        %846 = vmatprep.subr.mxu0 0.0
        %847 = vmatpush1.msra.mxu0 %v410
        %848 = vmatprep.subr.mxu0 0.0
        %849 = vmatpush1.msra.mxu0 0.0
        %850 = vmatprep.subr.mxu0 0.0
        %851 = vmatpush1.msra.mxu0 0.0
        %852 = vmatprep.subr.mxu0 0.0
        %853 = vmatpush1.msra.mxu0 0.0
        %854 = vmatprep.subr.mxu0 0.0
        %855 = vmatpush1.msra.mxu0 0.0
        %856 = vmatprep.subr.mxu0 0.0
        %857 = vmatpush1.msra.mxu0 0.0
        %858 = vmatprep.subr.mxu0 0.0
        %859 = vmatpush1.msra.mxu0 0.0
        %860 = vmatprep.subr.mxu0 0.0
        %861 = vmatpush1.msra.mxu0 0.0
        %862 = vmatprep.subr.mxu0 0.0
        %863 = vmatpush1.msra.mxu0 0.0
        %864 = vmatprep.subr.mxu0 0.0
        %865 = vmatpush1.msra.mxu0 0.0
        %866 = vmatprep.subr.mxu0 0.0
        %867 = vmatpush1.msra.mxu0 0.0
        %868 = vmatprep.subr.mxu0 0.0
        %869 = vmatpush1.msra.mxu0 0.0
        %870 = vmatprep.subr.mxu0 0.0
        %871 = vmatpush1.msra.mxu0 0.0
        %872 = vmatprep.subr.mxu0 0.0
        %873 = vmatpush1.msra.mxu0 0.0
        %874 = vmatprep.subr.mxu0 0.0
        %875 = vmatpush1.msra.mxu0 0.0
        %876 = vmatprep.subr.mxu0 0.0
        %877 = vmatpush1.msra.mxu0 0.0
        %878 = vmatprep.subr.mxu0 0.0
        %879 = vmatpush1.msra.mxu0 0.0
        %880 = vmatprep.subr.mxu0 0.0
        %881 = vmatpush1.msra.mxu0 0.0
        %882 = vmatprep.subr.mxu0 0.0
        %883 = vmatpush1.msra.mxu0 0.0
        %884 = vmatprep.subr.mxu0 0.0
        %885 = vmatpush1.msra.mxu0 0.0
        %886 = vmatprep.subr.mxu0 0.0
        %887 = vmatpush1.msra.mxu0 0.0
        %888 = vmatprep.subr.mxu0 0.0
        %889 = vmatpush1.msra.mxu0 0.0
        %890 = vmatprep.subr.mxu0 0.0
        %891 = vmatpush1.msra.mxu0 0.0
        %892 = vmatprep.subr.mxu0 0.0
        %893 = vmatpush1.msra.mxu0 0.0
        %894 = vmatprep.subr.mxu0 0.0
        %895 = vmatpush1.msra.mxu0 0.0
        %896 = vmatprep.mubr.f32.mxu0 0.0
        %897 = vmatmul.mubr.f32.gmra.mrb[0].mxu0 %v598
        %v898 = vpop.f32.mrb[0].mxu0
        %v899 = vadd.f32 %v824, %v898
        %v900 = vpop.f32.mrb[0].mxu0
        %901 = vmatprep.mubr.f32.mxu0 0.0
        %902 = vmatmul.mubr.f32.gmra.mrb[0].mxu0 %v601
        %v903 = vpop.f32.mrb[0].mxu0
        %v904 = vadd.f32 %v829, %v903
        %v905 = vpop.f32.mrb[0].mxu0
        %906 = vdwg.mxu0
        %v907 = vmul.f32 %v747, %v747
        %v908 = vmul.f32 %v753, %v753
        %911 = vrot.lane.b32.xlu0 %v747, 64
        %v912 = vpop.permute.xlu0 %911
        %913 = vrot.lane.b32.xlu0 %v753, 64
        %v914 = vpop.permute.xlu0 %913
        %v917 = vmul.f32 %v747, %v912
        %v918 = vmul.f32 %v753, %v914
        %v919 = vsub.f32 %v749, %v907
        %v920 = vsub.f32 %v755, %v908
        %v921 = vsub.f32 %v899, %v917
        %v922 = vsub.f32 %v904, %v918
        %v923 = vmul.f32 %v917, 2.0
        %v924 = vmul.f32 %v918, 2.0
        %v925 = vadd.f32 %v923, 0.0001
        %v926 = vadd.f32 %v924, 0.0001
        %v927 = vmul.f32 %v921, 2.0
        %v928 = vmul.f32 %v922, 2.0
        %v929 = vadd.f32 %v927, 0.0009
        %v930 = vadd.f32 %v928, 0.0009
        %v931 = vmul.f32 %v925, %v929
        %v932 = vmul.f32 %v926, %v930
        %935 = vrot.lane.b32.xlu0 %v907, 64
        %v936 = vpop.permute.xlu0 %935
        %937 = vrot.lane.b32.xlu0 %v908, 64
        %v938 = vpop.permute.xlu0 %937
        %v941 = vadd.f32 %v907, %v936
        %v942 = vadd.f32 %v908, %v938
        %v943 = vadd.f32 %v941, 0.0001
        %v944 = vadd.f32 %v942, 0.0001
        %947 = vrot.lane.b32.xlu0 %v919, 64
        %v948 = vpop.permute.xlu0 %947
        %949 = vrot.lane.b32.xlu0 %v920, 64
        %v950 = vpop.permute.xlu0 %949
        %v953 = vadd.f32 %v919, %v948
        %v954 = vadd.f32 %v920, %v950
        %v955 = vadd.f32 %v953, 0.0009
        %v956 = vadd.f32 %v954, 0.0009
        %v957 = vmul.f32 %v943, %v955
        %v958 = vmul.f32 %v944, %v956
        %v959 = vrcp.pop %v957
        %v960 = vmul.f32 %v931, %v959
        %v961 = vrcp.pop %v958
        %v962 = vmul.f32 %v932, %v961
        %v963 = vsel %vm433, %v960, 0.0
        %v964 = vsel %vm433, %v962, 0.0
        %v965 = vadd.f32 %v963, %v964
        %966 = vadd.xlane.f32.xlu0 %v965
        %v967 = vpop.xlane.xlu0 %966
        %v968 = vrot.slane %v967, 4
        %v969 = vadd.f32 %v967, %v968
        %v970 = vrot.slane %v969, 2
        %v971 = vadd.f32 %v969, %v970
        %v972 = vrot.slane %v971, 1
        %v973 = vadd.f32 %v971, %v972
        %s974 = vtos %v973
        %v975 = vstv %s974
        %976 = vst [vmem:[%s284] sm:$0xff] %v975
        %s977 = sand.u32 %s127, 1
        %s978 = scalar_lea.sflag [#allocation4], %s977
        %s979 = sand.u32 %s127, 1
        %s980 = smul.addr %s979, 8
        %s981 = scalar_lea.vmem [#allocation10], %s980
        // Predicated region
        $region53: #{tpu_custom_call.1} parent=35 // pred_check
          %p982 = pneg %p137
        $region54: #{tpu_custom_call.1} parent=35 // pred_check_branch
          %984 = sbr.rel (%p982) target = $region56
        $region55: #{tpu_custom_call.1} parent=35 // pred_region
          %s986 = ssub.s32 128, 128
          %987 = vsyncadd %s978, %s986
          %s988 = smul.addr %s25, 128
          %s989 = scalar_lea.hbm %s4, %s988
          %s991 = sshll.u32 %s981, 4
          %s992 = int_to_ptr.vmem [resolvable:$true] %s991
          %994 = dma.vmem_to_hbm [thread:$0]  %s992, 128, %s989, %s978
        $region56: #{tpu_custom_call.1} parent=35 // pred_fallthru
          _
      $region36: #{tpu_custom_call.1} parent=5 // pred_fallthru
        _
      %p995 = scmp.le.s32.totalorder 2, %s20
      // Predicated region
      $region57: #{tpu_custom_call.1} parent=5 // pred_check
        %p996 = pneg %p995
      $region58: #{tpu_custom_call.1} parent=5 // pred_check_branch
        %998 = sbr.rel (%p996) target = $region60
      $region59: #{tpu_custom_call.1} parent=5 // pred_region
        %s999 = ssub.s32 %s20, 2
        // Predicated region
        $region61: #{tpu_custom_call.1} parent=59 // pred_check
          %p1000 = pneg %p143
        $region62: #{tpu_custom_call.1} parent=59 // pred_check_branch
          %1002 = sbr.rel (%p1000) target = $region64
        $region63: #{tpu_custom_call.1} parent=59 // pred_region
          %s1003 = sand.u32 %s128, 1
          %s1004 = scalar_lea.sflag [#allocation4], %s1003
          %s1005 = sand.u32 %s128, 1
          %s1006 = smul.addr %s1005, 8
          %s1007 = scalar_lea.vmem [#allocation10], %s1006
          %1008 = dma.done %s1004, 128
        $region64: #{tpu_custom_call.1} parent=59 // pred_fallthru
          _
      $region60: #{tpu_custom_call.1} parent=5 // pred_fallthru
        _
    $region6: #{tpu_custom_call.1} parent=1 // loop_footer
      %s24 = sadd.s32 1, %s20
    $region7: #{tpu_custom_call.1} parent=1 // loop_footer_branch
      %19 = sbr.rel target = $region3
    $region8: #{tpu_custom_call.1} parent=1 // loop_exit
      _
    %1009 = vsyncpa [#allocation3], 1
    %s1010 = scalar_lea.sflag [#allocation3], 1
    %1011 = vsyncpa %s1010, 1
    %1012 = vsyncpa [#allocation6], 1
    %s1013 = scalar_lea.sflag [#allocation6], 1
    %1014 = vsyncpa %s1013, 1
    %1015 = vsyncpa [#allocation9], 1
    %1016 = vsyncpa [#allocation4], 1
    %s1017 = scalar_lea.sflag [#allocation4], 1
    %1018 = vsyncpa %s1017, 1

</llo_original>
